<compile_context>
chip_gen: v6e
topology: v6e:2x2x1
jax: 0.10.0
libtpu: 0.0.40
codegen_flags: <defaults>
</compile_context>

<pallas_src>
import jax
import jax.numpy as jnp
from jax.experimental import pallas as pl
from jax.experimental.pallas import tpu as pltpu

LANE = 128            # vreg lane width
MAX_TILE_ROWS = 1024  # (1024, 128) f32 tile = 512 KiB per buffer


def ihd_kernel(p_ref, i_ref, h_ref, di_ref, dh_ref, dd_ref):
    # p_ref (SMEM, shape (4,)): [cI, cH, nu, l] where
    #   cI = b1 + b2*sigmoid(t - start) - g - nu   (scalar algebra hoisted)
    #   cH = g + l
    cI = p_ref[0]
    cH = p_ref[1]
    nu = p_ref[2]
    l = p_ref[3]

    I = i_ref[...]
    H = h_ref[...]

    di_ref[...] = cI * I                 # dI = b*I - g*I - nu*I
    dh_ref[...] = nu * I - cH * H        # dH = nu*I - g*H - l*H
    dd_ref[...] = l * H                  # dD = l*H


def ihd_forward(t, y, b1, b2, g, nu, l, start):
    """Pallas equivalent of IHD_model.forward(t, y).

    t: scalar; y: (N, 3) float32 with columns (I, H, D).
    Returns (3N,) = concat(dI, dH, dD), matching torch.cat((dI, dH, dD), 0).
    """
    y = y.astype(jnp.float32)
    n = y.shape[0]

    # TODO(synk): an upstream SoA state layout (separate I/H arrays) would
    # remove these strided column gathers; the (N, 3) interface forces them.
    I = y[:, 0]
    H = y[:, 1]
    # D column (y[:, 2]) is unused by the ODE -> never loaded into the kernel.

    # Dense lane-aligned slabs: (rows, 128), rows a multiple of the row tile.
    rows = pl.cdiv(n, LANE)
    tile_rows = min(MAX_TILE_ROWS, max(8, rows))
    tile_rows = ((tile_rows + 7) // 8) * 8               # sublane alignment
    padded_rows = ((rows + tile_rows - 1) // tile_rows) * tile_rows
    padded_n = padded_rows * LANE
    num_tiles = padded_rows // tile_rows

    I2 = jnp.pad(I, (0, padded_n - n)).reshape(padded_rows, LANE)
    H2 = jnp.pad(H, (0, padded_n - n)).reshape(padded_rows, LANE)

    # Hoist all scalar algebra (incl. the sigmoid) out of the per-element math.
    b = b1 + b2 * jax.nn.sigmoid(t - start)
    cI = b - g - nu
    cH = g + l
    params = jnp.array([cI, cH, nu, l], dtype=jnp.float32)

    tile_spec = pl.BlockSpec((tile_rows, LANE), lambda i: (i, 0))
    out_sds = jax.ShapeDtypeStruct((padded_rows, LANE), jnp.float32)

    dI2, dH2, dD2 = pl.pallas_call(
        ihd_kernel,
        out_shape=(out_sds, out_sds, out_sds),
        grid=(num_tiles,),
        in_specs=[
            pl.BlockSpec(memory_space=pltpu.SMEM),  # scalar params
            tile_spec,                              # I slab
            tile_spec,                              # H slab
        ],
        out_specs=(tile_spec, tile_spec, tile_spec),
        compiler_params=pltpu.CompilerParams(
            dimension_semantics=("parallel",),
        ),
    )(params, I2, H2)

    dI = dI2.reshape(-1)[:n]
    dH = dH2.reshape(-1)[:n]
    dD = dD2.reshape(-1)[:n]
    return jnp.concatenate((dI, dH, dD), 0)


def ihd_reference(t, y, b1, b2, g, nu, l, start):
    I = y[:, 0]
    H = y[:, 1]
    b = b1 + b2 * jax.nn.sigmoid(t - start)
    dI = b * I - g * I - nu * I
    dH = nu * I - g * H - l * H
    dD = l * H
    return jnp.concatenate((dI, dH, dD), 0)


if __name__ == "__main__":
    key = jax.random.PRNGKey(0)

    # Deterministic "parameters" (module __init__ takes 5 scalar parms + start).
    b1 = 0.30
    b2 = -0.20
    g = 0.10
    nu = 0.05
    l = 0.02
    start = 10.0
    t = jnp.float32(5.0)

    for N in (8, 333):
        key, sub = jax.random.split(key)
        y = jax.random.uniform(sub, (N, 3), dtype=jnp.float32)  # cols: I, H, D

        out = ihd_forward(t, y, b1, b2, g, nu, l, start)
        out = jax.block_until_ready(out)

        ref = ihd_reference(t, y, b1, b2, g, nu, l, start)
        assert out.shape == (3 * N,), (out.shape, N)
        assert jnp.allclose(out, ref, atol=1e-5, rtol=1e-5), (out, ref)

    print("KERNEL_OK")
</pallas_src>

<mosaic_0001>
module attributes {stable_mosaic.version = 11 : i64} {
  func.func @ihd_kernel(%arg0: i32, %arg1: memref<4xf32, #tpu.memory_space<smem>>, %arg2: memref<8x128xf32, #tpu.memory_space<vmem>>, %arg3: memref<8x128xf32, #tpu.memory_space<vmem>>, %arg4: memref<8x128xf32, #tpu.memory_space<vmem>>, %arg5: memref<8x128xf32, #tpu.memory_space<vmem>>, %arg6: memref<8x128xf32, #tpu.memory_space<vmem>>) attributes {dimension_semantics = [#tpu.dimension_semantics<parallel>], iteration_bounds = array<i64: 1>, scalar_prefetch = 0 : i64, scratch_operands = 0 : i64, tpu.core_type = #tpu.core_type<tc>, window_params = [{transform_indices = @transform_0, window_bounds = array<i64: 4>}, {transform_indices = @transform_1, window_bounds = array<i64: 8, 128>}, {transform_indices = @transform_2, window_bounds = array<i64: 8, 128>}, {transform_indices = @transform_3, window_bounds = array<i64: 8, 128>}, {transform_indices = @transform_4, window_bounds = array<i64: 8, 128>}, {transform_indices = @transform_5, window_bounds = array<i64: 8, 128>}]} {
    %c0 = arith.constant 0 : index
    %0 = memref.load %arg1[%c0] : memref<4xf32, #tpu.memory_space<smem>>
    %c1 = arith.constant 1 : index
    %1 = memref.load %arg1[%c1] : memref<4xf32, #tpu.memory_space<smem>>
    %c2 = arith.constant 2 : index
    %2 = memref.load %arg1[%c2] : memref<4xf32, #tpu.memory_space<smem>>
    %c3 = arith.constant 3 : index
    %3 = memref.load %arg1[%c3] : memref<4xf32, #tpu.memory_space<smem>>
    %c0_0 = arith.constant 0 : index
    %c0_1 = arith.constant 0 : index
    %4 = vector.load %arg2[%c0_0, %c0_1] : memref<8x128xf32, #tpu.memory_space<vmem>>, vector<8x128xf32>
    %c0_2 = arith.constant 0 : index
    %c0_3 = arith.constant 0 : index
    %5 = vector.load %arg3[%c0_2, %c0_3] : memref<8x128xf32, #tpu.memory_space<vmem>>, vector<8x128xf32>
    %6 = vector.broadcast %0 : f32 to vector<8x128xf32>
    %7 = arith.mulf %6, %4 : vector<8x128xf32>
    %c0_4 = arith.constant 0 : index
    %c0_5 = arith.constant 0 : index
    %8 = vector.load %arg4[%c0_4, %c0_5] : memref<8x128xf32, #tpu.memory_space<vmem>>, vector<8x128xf32>
    tpu.vector_store %arg4[%c0_4, %c0_5], %7 {strides = array<i32>} : memref<8x128xf32, #tpu.memory_space<vmem>>, vector<8x128xf32>,
    %9 = vector.broadcast %2 : f32 to vector<8x128xf32>
    %10 = arith.mulf %9, %4 : vector<8x128xf32>
    %11 = vector.broadcast %1 : f32 to vector<8x128xf32>
    %12 = arith.mulf %11, %5 : vector<8x128xf32>
    %13 = arith.subf %10, %12 : vector<8x128xf32>
    %c0_6 = arith.constant 0 : index
    %c0_7 = arith.constant 0 : index
    %14 = vector.load %arg5[%c0_6, %c0_7] : memref<8x128xf32, #tpu.memory_space<vmem>>, vector<8x128xf32>
    tpu.vector_store %arg5[%c0_6, %c0_7], %13 {strides = array<i32>} : memref<8x128xf32, #tpu.memory_space<vmem>>, vector<8x128xf32>,
    %15 = vector.broadcast %3 : f32 to vector<8x128xf32>
    %16 = arith.mulf %15, %5 : vector<8x128xf32>
    %c0_8 = arith.constant 0 : index
    %c0_9 = arith.constant 0 : index
    %17 = vector.load %arg6[%c0_8, %c0_9] : memref<8x128xf32, #tpu.memory_space<vmem>>, vector<8x128xf32>
    tpu.vector_store %arg6[%c0_8, %c0_9], %16 {strides = array<i32>} : memref<8x128xf32, #tpu.memory_space<vmem>>, vector<8x128xf32>,
    return
  }
  func.func @transform_0(%arg0: i32) -> i32 {
    %c0_i32 = arith.constant 0 : i32
    %c0_i32_0 = arith.constant 0 : i32
    return %c0_i32 : i32
  }
  func.func @transform_1(%arg0: i32) -> (i32, i32) {
    %c0_i32 = arith.constant 0 : i32
    %c0_i32_0 = arith.constant 0 : i32
    return %arg0, %c0_i32 : i32, i32
  }
  func.func @transform_2(%arg0: i32) -> (i32, i32) {
    %c0_i32 = arith.constant 0 : i32
    %c0_i32_0 = arith.constant 0 : i32
    return %arg0, %c0_i32 : i32, i32
  }
  func.func @transform_3(%arg0: i32) -> (i32, i32) {
    %c0_i32 = arith.constant 0 : i32
    %c0_i32_0 = arith.constant 0 : i32
    return %arg0, %c0_i32 : i32, i32
  }
  func.func @transform_4(%arg0: i32) -> (i32, i32) {
    %c0_i32 = arith.constant 0 : i32
    %c0_i32_0 = arith.constant 0 : i32
    return %arg0, %c0_i32 : i32, i32
  }
  func.func @transform_5(%arg0: i32) -> (i32, i32) {
    %c0_i32 = arith.constant 0 : i32
    %c0_i32_0 = arith.constant 0 : i32
    return %arg0, %c0_i32 : i32, i32
  }
}

</mosaic_0001>

<llo_original>
// kernel: tpu_custom_call.1
$region0: #{tpu_custom_call.1}
  #allocation0 [shape = 'u32[]', space=smem, size = 0x4, offset = 0x4, fixed_abs, tag = 'smem constant byte address 0x4 - core index']
  #allocation1 [shape = 'u32[144,128]{1,0:T(1,128)}', space=vmem, size = 0x12000, scoped, tag = 'internal scratch']
  %s0 = inlined_call_operand.hbm [shape: f32[4], index: 0, kind: input, shape index: {}]
  %s1 = inlined_call_operand.hbm [shape: f32[8,128], index: 1, kind: input, shape index: {}]
  %s2 = inlined_call_operand.hbm [shape: f32[8,128], index: 2, kind: input, shape index: {}]
  %s3 = inlined_call_operand.hbm [shape: f32[8,128], index: 3, kind: output, shape index: {0}]
  %s4 = inlined_call_operand.hbm [shape: f32[8,128], index: 4, kind: output, shape index: {1}]
  %s5 = inlined_call_operand.hbm [shape: f32[8,128], index: 5, kind: output, shape index: {2}]
  %6 = xla_tuple %s3, %s4, %s5
  %s7 = sld [smem:[#allocation0]]
  $region50: #{tpu_custom_call.1} parent=0
    _
  %s9 = ssub.s32 1, %s7
  %s10 = scalar_select 0, %s9, %s7
  $region1: #{tpu_custom_call.1} parent=0
    #allocation2 [shape = 'u8[512]{0}', space=smem, size = 0x200, scoped, tag = 'input window, operand 0, single buffered']
    #allocation3 [shape = 's32[1]{0}', space=sflag, size = 0x4, scoped, tag = 'scoped memory for tpu_custom_call.1']
    #allocation4 [shape = 's32[1]{0}', space=sflag, size = 0x4, scoped, tag = 'scoped memory for tpu_custom_call.1']
    #allocation5 [shape = 's32[1]{0}', space=sflag, size = 0x4, scoped, tag = 'scoped memory for tpu_custom_call.1']
    #allocation6 [shape = 'u8[4096]{0}', space=vmem, size = 0x1000, scoped, tag = 'input window, operand 1, single buffered']
    #allocation7 [shape = 'u8[4096]{0}', space=vmem, size = 0x1000, scoped, tag = 'input window, operand 2, single buffered']
    #allocation8 [shape = 's32[1]{0}', space=sflag, size = 0x4, scoped, tag = 'scoped memory for tpu_custom_call.1']
    #allocation9 [shape = 'u8[4096]{0}', space=vmem, size = 0x1000, scoped, tag = 'output window, operand 0, single buffered']
    #allocation10 [shape = 'u8[4096]{0}', space=vmem, size = 0x1000, scoped, tag = 'output window, operand 1, single buffered']
    #allocation11 [shape = 's32[1]{0}', space=sflag, size = 0x4, scoped, tag = 'scoped memory for tpu_custom_call.1']
    #allocation12 [shape = 'u8[4096]{0}', space=vmem, size = 0x1000, scoped, tag = 'output window, operand 2, single buffered']
    %11 = vsyncpa [#allocation5], 0
    %12 = vsyncpa [#allocation3], 0
    %13 = vsyncpa [#allocation8], 0
    %14 = vsyncpa [#allocation4], 0
    %15 = vsyncpa [#allocation11], 0
    // Predicated region
    $region2: #{tpu_custom_call.1} parent=1 // pred_check
      _
    $region3: #{tpu_custom_call.1} parent=1 // pred_check_branch
      %17 = sbr.rel (0) target = $region5
    $region4: #{tpu_custom_call.1} parent=1 // pred_region
      %s19 = ssub.s32 16, 16
      %20 = vsyncadd [#allocation5], %s19
      %23 = dma.hbm_to_smem %s0, 16, [#allocation2], [#allocation5]
    $region5: #{tpu_custom_call.1} parent=1 // pred_fallthru
      _
    // Predicated region
    $region6: #{tpu_custom_call.1} parent=1 // pred_check
      _
    $region7: #{tpu_custom_call.1} parent=1 // pred_check_branch
      %25 = sbr.rel (0) target = $region9
    $region8: #{tpu_custom_call.1} parent=1 // pred_region
      %s27 = ssub.s32 128, 128
      %28 = vsyncadd [#allocation3], %s27
      %s30 = sshll.u32 [#allocation6], 4
      %s31 = int_to_ptr.vmem [resolvable:$true] %s30
      %33 = dma.hbm_to_vmem [thread:$0]  %s1, 128, %s31, [#allocation3]
    $region9: #{tpu_custom_call.1} parent=1 // pred_fallthru
      _
    // Predicated region
    $region10: #{tpu_custom_call.1} parent=1 // pred_check
      _
    $region11: #{tpu_custom_call.1} parent=1 // pred_check_branch
      %35 = sbr.rel (0) target = $region13
    $region12: #{tpu_custom_call.1} parent=1 // pred_region
      %s37 = ssub.s32 128, 128
      %38 = vsyncadd [#allocation8], %s37
      %s40 = sshll.u32 [#allocation7], 4
      %s41 = int_to_ptr.vmem [resolvable:$true] %s40
      %43 = dma.hbm_to_vmem [thread:$0]  %s2, 128, %s41, [#allocation8]
    $region13: #{tpu_custom_call.1} parent=1 // pred_fallthru
      _
    // Predicated region
    $region14: #{tpu_custom_call.1} parent=1 // pred_check
      _
    $region15: #{tpu_custom_call.1} parent=1 // pred_check_branch
      %45 = sbr.rel (0) target = $region17
    $region16: #{tpu_custom_call.1} parent=1 // pred_region
      %46 = dma.done [#allocation5], 16
    $region17: #{tpu_custom_call.1} parent=1 // pred_fallthru
      _
    // Predicated region
    $region18: #{tpu_custom_call.1} parent=1 // pred_check
      _
    $region19: #{tpu_custom_call.1} parent=1 // pred_check_branch
      %48 = sbr.rel (0) target = $region21
    $region20: #{tpu_custom_call.1} parent=1 // pred_region
      %49 = dma.done [#allocation3], 128
    $region21: #{tpu_custom_call.1} parent=1 // pred_fallthru
      _
    // Predicated region
    $region22: #{tpu_custom_call.1} parent=1 // pred_check
      _
    $region23: #{tpu_custom_call.1} parent=1 // pred_check_branch
      %51 = sbr.rel (0) target = $region25
    $region24: #{tpu_custom_call.1} parent=1 // pred_region
      %52 = dma.done [#allocation8], 128
    $region25: #{tpu_custom_call.1} parent=1 // pred_fallthru
      _
    %53 = sfence
    %s54 = sld [smem:[#allocation2]]
    %s55 = sld [smem:[#allocation2 + $0x1]]
    %s56 = sld [smem:[#allocation2 + $0x2]]
    %s57 = sld [smem:[#allocation2 + $0x3]]
    %v58 = vld [vmem:[#allocation6] sm:$0xff]
    %v59 = vld [vmem:[#allocation7] sm:$0xff]
    %v60 = vstv %s54
    %v61 = vmul.f32 %v60, %v58
    %62 = vst [vmem:[#allocation9] sm:$0xff] %v61
    %v63 = vstv %s56
    %v64 = vmul.f32 %v63, %v58
    %v65 = vstv %s55
    %v66 = vmul.f32 %v65, %v59
    %v67 = vsub.f32 %v64, %v66
    %68 = vst [vmem:[#allocation10] sm:$0xff] %v67
    %v69 = vstv %s57
    %v70 = vmul.f32 %v69, %v59
    %71 = vst [vmem:[#allocation12] sm:$0xff] %v70
    // Predicated region
    $region26: #{tpu_custom_call.1} parent=1 // pred_check
      _
    $region27: #{tpu_custom_call.1} parent=1 // pred_check_branch
      %73 = sbr.rel (0) target = $region29
    $region28: #{tpu_custom_call.1} parent=1 // pred_region
      %s75 = ssub.s32 128, 128
      %76 = vsyncadd [#allocation4], %s75
      %s78 = sshll.u32 [#allocation9], 4
      %s79 = int_to_ptr.vmem [resolvable:$true] %s78
      %81 = dma.vmem_to_hbm [thread:$0]  %s79, 128, %s3, [#allocation4]
    $region29: #{tpu_custom_call.1} parent=1 // pred_fallthru
      _
    // Predicated region
    $region30: #{tpu_custom_call.1} parent=1 // pred_check
      _
    $region31: #{tpu_custom_call.1} parent=1 // pred_check_branch
      %83 = sbr.rel (0) target = $region33
    $region32: #{tpu_custom_call.1} parent=1 // pred_region
      %s85 = ssub.s32 128, 128
      %86 = vsyncadd [#allocation11], %s85
      %s88 = sshll.u32 [#allocation10], 4
      %s89 = int_to_ptr.vmem [resolvable:$true] %s88
      %91 = dma.vmem_to_hbm [thread:$0]  %s89, 128, %s4, [#allocation11]
    $region33: #{tpu_custom_call.1} parent=1 // pred_fallthru
      _
    // Predicated region
    $region34: #{tpu_custom_call.1} parent=1 // pred_check
      _
    $region35: #{tpu_custom_call.1} parent=1 // pred_check_branch
      %93 = sbr.rel (0) target = $region37
    $region36: #{tpu_custom_call.1} parent=1 // pred_region
      %s95 = ssub.s32 128, 128
      %96 = vsyncadd [#allocation11], %s95
      %s98 = sshll.u32 [#allocation12], 4
      %s99 = int_to_ptr.vmem [resolvable:$true] %s98
      %101 = dma.vmem_to_hbm [thread:$0]  %s99, 128, %s5, [#allocation11]
    $region37: #{tpu_custom_call.1} parent=1 // pred_fallthru
      _
    // Predicated region
    $region38: #{tpu_custom_call.1} parent=1 // pred_check
      _
    $region39: #{tpu_custom_call.1} parent=1 // pred_check_branch
      %103 = sbr.rel (0) target = $region41
    $region40: #{tpu_custom_call.1} parent=1 // pred_region
      %104 = dma.done [#allocation4], 128
    $region41: #{tpu_custom_call.1} parent=1 // pred_fallthru
      _
    // Predicated region
    $region42: #{tpu_custom_call.1} parent=1 // pred_check
      _
    $region43: #{tpu_custom_call.1} parent=1 // pred_check_branch
      %106 = sbr.rel (0) target = $region45
    $region44: #{tpu_custom_call.1} parent=1 // pred_region
      %107 = dma.done [#allocation11], 128
    $region45: #{tpu_custom_call.1} parent=1 // pred_fallthru
      _
    // Predicated region
    $region46: #{tpu_custom_call.1} parent=1 // pred_check
      _
    $region47: #{tpu_custom_call.1} parent=1 // pred_check_branch
      %109 = sbr.rel (0) target = $region49
    $region48: #{tpu_custom_call.1} parent=1 // pred_region
      %110 = dma.done [#allocation11], 128
    $region49: #{tpu_custom_call.1} parent=1 // pred_fallthru
      _
    %111 = vsyncpa [#allocation3], 1
    %112 = vsyncpa [#allocation8], 1
    %113 = vsyncpa [#allocation4], 1
    %114 = vsyncpa [#allocation11], 1
    %115 = vsyncpa [#allocation5], 1

</llo_original>
